<compile_context>
chip_gen: v5e
topology: v5e:2x2
jax: 0.10.0
libtpu: 0.0.40
codegen_flags: <defaults>
</compile_context>

<pallas_src>
import math

import jax
import jax.numpy as jnp
from jax import lax
from jax.experimental import pallas as pl
from jax.experimental.pallas import tpu as pltpu


_FAST_PATH_MAX_BYTES = 1 << 20      # below this, lax.slice beats any pallas_call
_MIN_CONTIG_RUN_BYTES = 512         # shorter contiguous runs kill strided-DMA efficiency
_TARGET_DESC_BYTES = 4 << 20        # aim for ~4 MiB per DMA descriptor
_MIN_BYTES_PER_STEP = 4 << 20       # keep per-grid-step overhead under ~10%
_MAX_GRID_STEPS = 8                 # even split across v7x's 2 TensorCores
_RING = 4                           # DMA descriptors kept in flight per grid step

_MODE_DIM1 = "chunk_dim1"           # blk0 == 1, chunk the cropped dim-1
_MODE_DIM0 = "block_dim0"           # blk1 == n1, block the cropped dim-0


def _cdiv(a, b):
    return -(-a // b)


def _normalize_crop(crop, shape):
    """((begin, end), ...) with None / negatives -> absolute (b, e) per dim."""
    bounds = []
    for dim, size in enumerate(shape):
        b, e = crop[dim] if dim < len(crop) else (None, None)
        b = 0 if b is None else (b + size if b < 0 else b)
        e = size if e is None else (e + size if e < 0 else e)
        b = max(0, min(b, size))
        e = max(b, min(e, size))
        bounds.append((b, e))
    return tuple(bounds)


def _contig_run_bytes(out_shape, in_shape, itemsize):
    """Bytes of the longest contiguous run each DMA descriptor can copy."""
    run = itemsize
    for o, i in zip(reversed(out_shape), reversed(in_shape)):
        run *= o
        if o != i:
            break
    return run


def _make_crop_kernel(bounds, out_shape, mode, blk0, blk1, nd1, base_per, rem):
    n0, n1 = out_shape[0], out_shape[1]
    b0, b1 = bounds[0][0], bounds[1][0]
    src_tail = tuple(pl.ds(b, e - b) for (b, e) in bounds[2:])
    dst_tail = tuple(pl.ds(0, e - b) for (b, e) in bounds[2:])

    def slices(x_hbm, o_hbm, d):
        # Descriptor index d -> matching (src, dst) HBM windows.  Starts are
        # clamped so the ragged tail re-uses the full static block shape
        # (duplicate same-data writes instead of a second descriptor shape).
        if mode == _MODE_DIM1:
            i0 = d // nd1
            j = d - i0 * nd1
            s1 = jnp.minimum(j * blk1, n1 - blk1)
            src = x_hbm.at[(pl.ds(b0 + i0, 1), pl.ds(b1 + s1, blk1)) + src_tail]
            dst = o_hbm.at[(pl.ds(i0, 1), pl.ds(s1, blk1)) + dst_tail]
        else:
            s0 = jnp.minimum(d * blk0, n0 - blk0)
            src = x_hbm.at[(pl.ds(b0 + s0, blk0), pl.ds(b1, n1)) + src_tail]
            dst = o_hbm.at[(pl.ds(s0, blk0), pl.ds(0, n1)) + dst_tail]
        return src, dst

    def kernel(x_hbm, o_hbm, sem):
        g = pl.program_id(0)
        if rem == 0:
            # Even split: everything static.
            d_lo = g * base_per
            n_local = base_per
            prime_hi = min(_RING, n_local)
            steady_hi = max(_RING, n_local)
            drain_lo = max(n_local - _RING, 0)
        else:
            # Balanced split: first `rem` grid steps take one extra descriptor.
            d_lo = g * base_per + jnp.minimum(g, rem)
            n_local = base_per + jnp.where(g < rem, 1, 0)
            prime_hi = jnp.minimum(_RING, n_local)
            steady_hi = jnp.maximum(_RING, n_local)
            drain_lo = jnp.maximum(n_local - _RING, 0)

        def start(t):
            src, dst = slices(x_hbm, o_hbm, d_lo + t)
            pltpu.make_async_copy(src, dst, sem.at[t % _RING]).start()

        def wait(t):
            src, dst = slices(x_hbm, o_hbm, d_lo + t)
            pltpu.make_async_copy(src, dst, sem.at[t % _RING]).wait()

        def _prime(t, c):
            start(t)
            return c

        def _steady(t, c):
            wait(t - _RING)     # free the ring slot ...
            start(t)            # ... and immediately refill it
            return c

        def _drain(t, c):
            wait(t)
            return c

        # Semaphore ring: keep up to _RING copies in flight, drain all of them
        # before the kernel body ends (no copy left outstanding).
        lax.fori_loop(0, prime_hi, _prime, 0)
        lax.fori_loop(_RING, steady_hi, _steady, 0)
        lax.fori_loop(drain_lo, n_local, _drain, 0)

    return kernel


def crop_pallas(x, crop):
    bounds = _normalize_crop(crop, x.shape)
    out_shape = tuple(e - b for (b, e) in bounds)
    starts = [b for (b, _) in bounds]
    limits = [e for (_, e) in bounds]
    itemsize = jnp.dtype(x.dtype).itemsize
    out_bytes = math.prod(out_shape) * itemsize

    # ---- fast path: let XLA's slice do the strided memcpy --------------------
    use_fast = (
        x.ndim < 2
        or any(s == 0 for s in out_shape)
        or out_shape == tuple(x.shape)                       # identity crop
        or out_bytes <= _FAST_PATH_MAX_BYTES                 # launch overhead dominates
        or _contig_run_bytes(out_shape, x.shape, itemsize) < _MIN_CONTIG_RUN_BYTES
    )
    # Sub-32-bit dtypes: window start/length AND the full last-dim row pitch
    # must stay 32-bit aligned, otherwise outer-dim offsets end up packed-
    # misaligned; fall back to lax.slice in that case.
    if not use_fast and itemsize < 4:
        wb, we = bounds[-1]
        if ((wb * itemsize) % 4 or ((we - wb) * itemsize) % 4
                or (x.shape[-1] * itemsize) % 4):
            use_fast = True
    if use_fast:
        return lax.slice(x, starts, limits)

    # ---- Pallas path: pipelined strided DMAs of the cropped region -----------
    n0, n1 = out_shape[0], out_shape[1]
    inner_bytes = math.prod(out_shape[2:]) * itemsize        # full cropped tail window
    row_bytes = n1 * inner_bytes                              # one cropped dim-0 slice

    if row_bytes >= _TARGET_DESC_BYTES:
        # One dim-0 row is already big: chunk dim-1 (balanced, non-divisor OK).
        mode = _MODE_DIM1
        nd1 = min(n1, _cdiv(row_bytes, _TARGET_DESC_BYTES))
        blk1 = _cdiv(n1, nd1)
        nd1 = _cdiv(n1, blk1)
        blk0 = 1
        ndesc = n0 * nd1
    else:
        # Rows are small: fold consecutive dim-0 rows into one strided DMA.
        mode = _MODE_DIM0
        blk0 = min(n0, max(1, _TARGET_DESC_BYTES // row_bytes))
        nd0 = _cdiv(n0, blk0)
        blk0 = _cdiv(n0, nd0)                                 # rebalance blocks
        nd0 = _cdiv(n0, blk0)
        blk1 = n1
        nd1 = 1
        ndesc = nd0

    # Grid steps: power of two (even TC split on v7x), capped at 8, never more
    # than the descriptor count, and each step moves >= _MIN_BYTES_PER_STEP so
    # the serial-loop overhead stays negligible on 1-TC v5e/v6e.
    g_cap = min(_MAX_GRID_STEPS, ndesc, max(1, out_bytes // _MIN_BYTES_PER_STEP))
    grid_steps = 1
    while grid_steps * 2 <= g_cap:
        grid_steps *= 2
    base_per = ndesc // grid_steps
    rem = ndesc % grid_steps

    # TODO(synk): crops whose minor-dim window is badly misaligned w.r.t. the
    # HBM tiling may lower to many short descriptors; route those to lax.slice
    # if profiling shows it.
    kernel = _make_crop_kernel(bounds, out_shape, mode, blk0, blk1, nd1,
                               base_per, rem)

    return pl.pallas_call(
        kernel,
        out_shape=jax.ShapeDtypeStruct(out_shape, x.dtype),
        grid=(grid_steps,),
        in_specs=[pl.BlockSpec(memory_space=pl.ANY)],
        out_specs=pl.BlockSpec(memory_space=pl.ANY),
        scratch_shapes=[pltpu.SemaphoreType.DMA((_RING,))],
        compiler_params=pltpu.CompilerParams(
            dimension_semantics=("parallel",)),
    )(x)


class Crop:
    """JAX/Pallas analogue of the PyTorch `Crop` module's forward pass."""

    def __init__(self, crop):
        self.crop = crop

    def __call__(self, x):
        return crop_pallas(x, self.crop)


if __name__ == "__main__":
    key = jax.random.PRNGKey(0)
    k1, k2, k3, k4 = jax.random.split(key, 4)

    def _ref(x, crop):
        return x[tuple(slice(b, e) for (b, e) in _normalize_crop(crop, x.shape))]

    def _check(x, crop):
        out = jax.block_until_ready(Crop(crop)(x))
        ref = _ref(x, crop)
        assert out.shape == ref.shape, (out.shape, ref.shape)
        assert out.dtype == ref.dtype, (out.dtype, ref.dtype)
        assert bool(jnp.array_equal(out, ref)), f"mismatch for crop={crop}"

    # 1) Small NCHW crop with None / negative bounds -> lax.slice fast path.
    x_small = jax.random.normal(k1, (2, 4, 16, 16), dtype=jnp.float32)
    _check(x_small, ((None, None), (1, 3), (2, -2), (-12, 12)))

    # 2) Pallas path, dim-0 blocking mode, collapses to a single strided DMA.
    x_a = jax.random.normal(k2, (4, 8, 128, 512), dtype=jnp.float32)
    _check(x_a, ((1, 3), (1, 7), (8, 120), (128, 512)))

    # 3) Pallas path, dim-0 blocked descriptors, 4 parallel grid steps with a
    #    ragged (balanced) descriptor split across steps.
    x_b = jax.random.normal(k3, (8, 6, 256, 1024), dtype=jnp.float32)
    _check(x_b, ((1, 7), (1, 5), (8, 248), (128, 896)))

    # 4) Pallas path, dim-1 chunking mode, multiple DMAs in flight per step,
    #    clamped (overlapping) chunk starts, 2 parallel grid steps.
    x_c = jax.random.normal(k4, (2, 4, 512, 2048), dtype=jnp.float32)
    _check(x_c, ((0, 2), (1, 3), (16, 496), (128, 1664)))

    print("KERNEL_OK")
</pallas_src>

<mosaic_0001>
module attributes {stable_mosaic.version = 11 : i64} {
  func.func @kernel(%arg0: i32, %arg1: memref<4x8x128x512xf32, #tpu.memory_space<any>>, %arg2: memref<2x6x112x384xf32, #tpu.memory_space<any>>, %arg3: memref<4x!tpu.dma_semaphore, #tpu.memory_space<semaphore_mem>>) attributes {dimension_semantics = [#tpu.dimension_semantics<parallel>], iteration_bounds = array<i64: 1>, scalar_prefetch = 0 : i64, scratch_operands = 1 : i64, tpu.core_type = #tpu.core_type<tc>, window_params = [{}, {}]} {
    %c1_i32 = arith.constant 1 : i32
    %0 = arith.muli %arg0, %c1_i32 : i32
    %c0_i32 = arith.constant 0 : i32
    %1 = arith.addi %0, %c0_i32 : i32
    %c2_i32 = arith.constant 2 : i32
    %2 = arith.muli %1, %c2_i32 : i32
    %c0_i32_0 = arith.constant 0 : i32
    %3 = arith.minsi %2, %c0_i32_0 : i32
    %c1_i32_1 = arith.constant 1 : i32
    %4 = arith.addi %c1_i32_1, %3 : i32
    %c4_i32 = arith.constant 4 : i32
    %c0_i32_2 = arith.constant 0 : i32
    %5 = arith.cmpi eq, %c4_i32, %c0_i32_2 : i32
    %c1_i32_3 = arith.constant 1 : i32
    %6 = arith.select %5, %c1_i32_3, %c4_i32 : i32
    %7 = arith.remsi %c0_i32, %6 : i32
    %c0_i32_4 = arith.constant 0 : i32
    %8 = arith.cmpi ne, %7, %c0_i32_4 : i32
    %c0_i32_5 = arith.constant 0 : i32
    %9 = arith.cmpi slt, %7, %c0_i32_5 : i32
    %c0_i32_6 = arith.constant 0 : i32
    %10 = arith.cmpi slt, %6, %c0_i32_6 : i32
    %11 = arith.xori %9, %10 : i1
    %12 = arith.andi %11, %8 : i1
    %13 = arith.addi %7, %6 : i32
    %14 = arith.select %12, %13, %7 : i32
    %c1_i32_7 = arith.constant 1 : i32
    %c8_i32 = arith.constant 8 : i32
    %c128_i32 = arith.constant 128 : i32
    %15 = tpu.memref_slice %arg1[%4, %c1_i32_7, %c8_i32, %c128_i32] : memref<4x8x128x512xf32, #tpu.memory_space<any>> -> memref<2x6x112x384xf32, #tpu.memory_space<any>>
    %c0_i32_8 = arith.constant 0 : i32
    %c0_i32_9 = arith.constant 0 : i32
    %c0_i32_10 = arith.constant 0 : i32
    %16 = tpu.memref_slice %arg2[%3, %c0_i32_8, %c0_i32_9, %c0_i32_10] : memref<2x6x112x384xf32, #tpu.memory_space<any>> -> memref<2x6x112x384xf32, #tpu.memory_space<any>>
    %17 = tpu.memref_slice %arg3[%14] : memref<4x!tpu.dma_semaphore, #tpu.memory_space<semaphore_mem>> -> memref<1x!tpu.dma_semaphore, #tpu.memory_space<semaphore_mem>>
    %18 = tpu.memref_squeeze %17 : memref<1x!tpu.dma_semaphore, #tpu.memory_space<semaphore_mem>> -> memref<!tpu.dma_semaphore, #tpu.memory_space<semaphore_mem>>
    tpu.enqueue_dma source(%15 : memref<2x6x112x384xf32, #tpu.memory_space<any>>) target(%16 : memref<2x6x112x384xf32, #tpu.memory_space<any>>) target_semaphore(%18 : memref<!tpu.dma_semaphore, #tpu.memory_space<semaphore_mem>>)
    %c1_i32_11 = arith.constant 1 : i32
    %c4_i32_12 = arith.constant 4 : i32
    %c0_i32_13 = arith.constant 0 : i32
    %19 = arith.addi %c4_i32_12, %c0_i32_13 : i32
    %c1_i32_14 = arith.constant 1 : i32
    scf.for %arg4 = %c4_i32_12 to %19 step %c1_i32_14  : i32 {
      %c4_i32_33 = arith.constant 4 : i32
      %38 = arith.subi %arg4, %c4_i32_33 : i32
      %39 = arith.addi %0, %38 : i32
      %c2_i32_34 = arith.constant 2 : i32
      %40 = arith.muli %39, %c2_i32_34 : i32
      %c0_i32_35 = arith.constant 0 : i32
      %41 = arith.minsi %40, %c0_i32_35 : i32
      %c1_i32_36 = arith.constant 1 : i32
      %42 = arith.addi %c1_i32_36, %41 : i32
      %c4_i32_37 = arith.constant 4 : i32
      %c0_i32_38 = arith.constant 0 : i32
      %43 = arith.cmpi eq, %c4_i32_37, %c0_i32_38 : i32
      %c1_i32_39 = arith.constant 1 : i32
      %44 = arith.select %43, %c1_i32_39, %c4_i32_37 : i32
      %45 = arith.remsi %38, %44 : i32
      %c0_i32_40 = arith.constant 0 : i32
      %46 = arith.cmpi ne, %45, %c0_i32_40 : i32
      %c0_i32_41 = arith.constant 0 : i32
      %47 = arith.cmpi slt, %45, %c0_i32_41 : i32
      %c0_i32_42 = arith.constant 0 : i32
      %48 = arith.cmpi slt, %44, %c0_i32_42 : i32
      %49 = arith.xori %47, %48 : i1
      %50 = arith.andi %49, %46 : i1
      %51 = arith.addi %45, %44 : i32
      %52 = arith.select %50, %51, %45 : i32
      %c1_i32_43 = arith.constant 1 : i32
      %c8_i32_44 = arith.constant 8 : i32
      %c128_i32_45 = arith.constant 128 : i32
      %53 = tpu.memref_slice %arg1[%42, %c1_i32_43, %c8_i32_44, %c128_i32_45] : memref<4x8x128x512xf32, #tpu.memory_space<any>> -> memref<2x6x112x384xf32, #tpu.memory_space<any>>
      %c0_i32_46 = arith.constant 0 : i32
      %c0_i32_47 = arith.constant 0 : i32
      %c0_i32_48 = arith.constant 0 : i32
      %54 = tpu.memref_slice %arg2[%41, %c0_i32_46, %c0_i32_47, %c0_i32_48] : memref<2x6x112x384xf32, #tpu.memory_space<any>> -> memref<2x6x112x384xf32, #tpu.memory_space<any>>
      %55 = tpu.memref_slice %arg3[%52] : memref<4x!tpu.dma_semaphore, #tpu.memory_space<semaphore_mem>> -> memref<1x!tpu.dma_semaphore, #tpu.memory_space<semaphore_mem>>
      %56 = tpu.memref_squeeze %55 : memref<1x!tpu.dma_semaphore, #tpu.memory_space<semaphore_mem>> -> memref<!tpu.dma_semaphore, #tpu.memory_space<semaphore_mem>>
      tpu.wait_dma2 semaphore(%56 : memref<!tpu.dma_semaphore, #tpu.memory_space<semaphore_mem>>) src(%53 : memref<2x6x112x384xf32, #tpu.memory_space<any>>) dst(%54 : memref<2x6x112x384xf32, #tpu.memory_space<any>>)
      %57 = arith.addi %0, %arg4 : i32
      %c2_i32_49 = arith.constant 2 : i32
      %58 = arith.muli %57, %c2_i32_49 : i32
      %c0_i32_50 = arith.constant 0 : i32
      %59 = arith.minsi %58, %c0_i32_50 : i32
      %c1_i32_51 = arith.constant 1 : i32
      %60 = arith.addi %c1_i32_51, %59 : i32
      %c4_i32_52 = arith.constant 4 : i32
      %c0_i32_53 = arith.constant 0 : i32
      %61 = arith.cmpi eq, %c4_i32_52, %c0_i32_53 : i32
      %c1_i32_54 = arith.constant 1 : i32
      %62 = arith.select %61, %c1_i32_54, %c4_i32_52 : i32
      %63 = arith.remsi %arg4, %62 : i32
      %c0_i32_55 = arith.constant 0 : i32
      %64 = arith.cmpi ne, %63, %c0_i32_55 : i32
      %c0_i32_56 = arith.constant 0 : i32
      %65 = arith.cmpi slt, %63, %c0_i32_56 : i32
      %c0_i32_57 = arith.constant 0 : i32
      %66 = arith.cmpi slt, %62, %c0_i32_57 : i32
      %67 = arith.xori %65, %66 : i1
      %68 = arith.andi %67, %64 : i1
      %69 = arith.addi %63, %62 : i32
      %70 = arith.select %68, %69, %63 : i32
      %c1_i32_58 = arith.constant 1 : i32
      %c8_i32_59 = arith.constant 8 : i32
      %c128_i32_60 = arith.constant 128 : i32
      %71 = tpu.memref_slice %arg1[%60, %c1_i32_58, %c8_i32_59, %c128_i32_60] : memref<4x8x128x512xf32, #tpu.memory_space<any>> -> memref<2x6x112x384xf32, #tpu.memory_space<any>>
      %c0_i32_61 = arith.constant 0 : i32
      %c0_i32_62 = arith.constant 0 : i32
      %c0_i32_63 = arith.constant 0 : i32
      %72 = tpu.memref_slice %arg2[%59, %c0_i32_61, %c0_i32_62, %c0_i32_63] : memref<2x6x112x384xf32, #tpu.memory_space<any>> -> memref<2x6x112x384xf32, #tpu.memory_space<any>>
      %73 = tpu.memref_slice %arg3[%70] : memref<4x!tpu.dma_semaphore, #tpu.memory_space<semaphore_mem>> -> memref<1x!tpu.dma_semaphore, #tpu.memory_space<semaphore_mem>>
      %74 = tpu.memref_squeeze %73 : memref<1x!tpu.dma_semaphore, #tpu.memory_space<semaphore_mem>> -> memref<!tpu.dma_semaphore, #tpu.memory_space<semaphore_mem>>
      tpu.enqueue_dma source(%71 : memref<2x6x112x384xf32, #tpu.memory_space<any>>) target(%72 : memref<2x6x112x384xf32, #tpu.memory_space<any>>) target_semaphore(%74 : memref<!tpu.dma_semaphore, #tpu.memory_space<semaphore_mem>>)
    }
    %c0_i32_15 = arith.constant 0 : i32
    %c0_i32_16 = arith.constant 0 : i32
    %20 = arith.addi %0, %c0_i32_16 : i32
    %c2_i32_17 = arith.constant 2 : i32
    %21 = arith.muli %20, %c2_i32_17 : i32
    %c0_i32_18 = arith.constant 0 : i32
    %22 = arith.minsi %21, %c0_i32_18 : i32
    %c1_i32_19 = arith.constant 1 : i32
    %23 = arith.addi %c1_i32_19, %22 : i32
    %c4_i32_20 = arith.constant 4 : i32
    %c0_i32_21 = arith.constant 0 : i32
    %24 = arith.cmpi eq, %c4_i32_20, %c0_i32_21 : i32
    %c1_i32_22 = arith.constant 1 : i32
    %25 = arith.select %24, %c1_i32_22, %c4_i32_20 : i32
    %26 = arith.remsi %c0_i32_16, %25 : i32
    %c0_i32_23 = arith.constant 0 : i32
    %27 = arith.cmpi ne, %26, %c0_i32_23 : i32
    %c0_i32_24 = arith.constant 0 : i32
    %28 = arith.cmpi slt, %26, %c0_i32_24 : i32
    %c0_i32_25 = arith.constant 0 : i32
    %29 = arith.cmpi slt, %25, %c0_i32_25 : i32
    %30 = arith.xori %28, %29 : i1
    %31 = arith.andi %30, %27 : i1
    %32 = arith.addi %26, %25 : i32
    %33 = arith.select %31, %32, %26 : i32
    %c1_i32_26 = arith.constant 1 : i32
    %c8_i32_27 = arith.constant 8 : i32
    %c128_i32_28 = arith.constant 128 : i32
    %34 = tpu.memref_slice %arg1[%23, %c1_i32_26, %c8_i32_27, %c128_i32_28] : memref<4x8x128x512xf32, #tpu.memory_space<any>> -> memref<2x6x112x384xf32, #tpu.memory_space<any>>
    %c0_i32_29 = arith.constant 0 : i32
    %c0_i32_30 = arith.constant 0 : i32
    %c0_i32_31 = arith.constant 0 : i32
    %35 = tpu.memref_slice %arg2[%22, %c0_i32_29, %c0_i32_30, %c0_i32_31] : memref<2x6x112x384xf32, #tpu.memory_space<any>> -> memref<2x6x112x384xf32, #tpu.memory_space<any>>
    %36 = tpu.memref_slice %arg3[%33] : memref<4x!tpu.dma_semaphore, #tpu.memory_space<semaphore_mem>> -> memref<1x!tpu.dma_semaphore, #tpu.memory_space<semaphore_mem>>
    %37 = tpu.memref_squeeze %36 : memref<1x!tpu.dma_semaphore, #tpu.memory_space<semaphore_mem>> -> memref<!tpu.dma_semaphore, #tpu.memory_space<semaphore_mem>>
    tpu.wait_dma2 semaphore(%37 : memref<!tpu.dma_semaphore, #tpu.memory_space<semaphore_mem>>) src(%34 : memref<2x6x112x384xf32, #tpu.memory_space<any>>) dst(%35 : memref<2x6x112x384xf32, #tpu.memory_space<any>>)
    %c1_i32_32 = arith.constant 1 : i32
    return
  }
}

</mosaic_0001>

<llo_original>
// kernel: tpu_custom_call.1
$region0: #{tpu_custom_call.1}
  #allocation0 [shape = 'u32[]', space=smem, size = 0x4, offset = 0x4, fixed_abs, tag = 'smem constant byte address 0x4 - core index']
  #allocation1 [shape = 'u32[72,128]{1,0:T(1,128)}', space=vmem, size = 0x9000, scoped, tag = 'internal scratch']
  #allocation2 [shape = 's32[4]{0}', space=sflag, size = 0x10, scoped, tag = 'scratch operand']
  #allocation3 [shape = 's32[]', space=sflag, size = 0x4, offset = 0, fixed_abs, tag = 'sflag constant byte address 0x0 - dummy sync flag']
  %s0 = inlined_call_operand.hbm [shape: f32[4,8,128,512], index: 0, kind: input, shape index: {}]
  %s1 = inlined_call_operand.hbm [shape: f32[2,6,112,384], index: 1, kind: output, shape index: {}]
  %s2 = sld [smem:[#allocation0]]
  $region2: #{tpu_custom_call.1} parent=0
    _
  %s4 = ssub.s32 1, %s2
  %s5 = scalar_select 0, %s4, %s2
  $region1: #{tpu_custom_call.1} parent=0
    #allocation4 [shape = 'u32[9]{0}', space=smem, size = 0x24, scoped, tag = 'DMA stride descriptor']
    %s6 = smul.u32 0, 2
    %p7 = scmp.lt.s32.totalorder %s6, 0
    %s8 = scalar_select %p7, %s6, 0
    %s9 = sadd.s32 %s8, 1
    %s10 = smul.u32 %s9, 512
    %s11 = sadd.s32 69, %s10
    %s12 = smul.addr %s11, 8
    %s13 = scalar_lea.hbm %s0, %s12
    %s14 = smul.u32 %s8, 252
    %s15 = smul.addr %s14, 8
    %s16 = scalar_lea.hbm %s1, %s15
    %s18 = sshll.u32 1, 14
    %s19 = sxor.u32 4294967295, %s18
    %s21 = sshll.u32 %s13, 4
    %s22 = int_to_ptr.hbm [resolvable:$true] %s21
    %s23 = sshll.u32 %s16, 4
    %s24 = int_to_ptr.hbm [resolvable:$true] %s23
    %32 = sst [smem:[#allocation4]] 65536
    %s33 = scalar_lea.smem [#allocation4], 1
    %34 = sst [smem:[%s33]] 32256
    %s35 = scalar_lea.smem [#allocation4], 2
    %36 = sst [smem:[%s35]] 6
    %s37 = scalar_lea.smem [#allocation4], 3
    %38 = sst [smem:[%s37]] 8192
    %s39 = scalar_lea.smem [#allocation4], 4
    %40 = sst [smem:[%s39]] 5376
    %s41 = scalar_lea.smem [#allocation4], 5
    %42 = sst [smem:[%s41]] 14
    %s43 = scalar_lea.smem [#allocation4], 6
    %44 = sst [smem:[%s43]] 512
    %s45 = scalar_lea.smem [#allocation4], 7
    %46 = sst [smem:[%s45]] 384
    %s47 = scalar_lea.smem [#allocation4], 8
    %48 = sst [smem:[%s47]] 24
    %50 = dma.general %s22, 64512, %s24, [#allocation2], [#allocation3], [#allocation4], 0, 0
    %s51 = smul.u32 8, 2
    %s52 = smul.u32 %s51, 6
    %s53 = smul.u32 %s52, 14
    %s54 = smul.u32 %s53, 3
    %s55 = sshll.u32 %s54, 4
    %56 = dma.done [#allocation2], %s55
  %57 = vsyncmov [#allocation2]
  %s58 = vpop.sfrf %57
  %p59 = scmp.eq.s32.totalorder %s58, 0
  %p60 = pneg %p59
  %62 = shalt.err (%p60)
  %s63 = scalar_lea.sflag [#allocation2], 1
  %64 = vsyncmov %s63
  %s65 = vpop.sfrf %64
  %p66 = scmp.eq.s32.totalorder %s65, 0
  %p67 = pneg %p66
  %69 = shalt.err (%p67)
  %s70 = scalar_lea.sflag [#allocation2], 2
  %71 = vsyncmov %s70
  %s72 = vpop.sfrf %71
  %p73 = scmp.eq.s32.totalorder %s72, 0
  %p74 = pneg %p73
  %76 = shalt.err (%p74)
  %s77 = scalar_lea.sflag [#allocation2], 3
  %78 = vsyncmov %s77
  %s79 = vpop.sfrf %78
  %p80 = scmp.eq.s32.totalorder %s79, 0
  %p81 = pneg %p80
  %83 = shalt.err (%p81)

</llo_original>
